<compile_context>
chip_gen: v7x
topology: tpu7x:2x2x1
jax: 0.10.0
libtpu: 0.0.40
codegen_flags: <defaults>
</compile_context>

<pallas_src>
import functools
import math

import jax
import jax.numpy as jnp
from jax import lax
from jax.experimental import pallas as pl
from jax.experimental.pallas import tpu as pltpu

_MASK_VALUE = -1e30  # large finite negative (diagonal is always unmasked)


def _mha_kernel(x_ref, wq_ref, bq_ref, wk_ref, bk_ref, wv_ref, bv_ref,
                wo_ref, bo_ref, o_ref, acc_ref, k_cache, v_cache, *, block_q):
    """One grid step = (batch b, q-tile qi, head h)."""
    qi = pl.program_id(1)
    h = pl.program_id(2)

    S = x_ref.shape[1]

    # ---- K/V projection: computed once per (batch, head) at the first q-tile
    # and cached in VMEM scratch; reused by all later q-tiles of this batch.
    @pl.when(qi == 0)
    def _():
        x_full = x_ref[0]                                           # [S, E] bf16
        k = jnp.dot(x_full, wk_ref[h],
                    preferred_element_type=jnp.float32) + bk_ref[h]  # [S, D] f32
        v = jnp.dot(x_full, wv_ref[h],
                    preferred_element_type=jnp.float32) + bv_ref[h]
        k_cache[h] = k.astype(k_cache.dtype)
        v_cache[h] = v.astype(v_cache.dtype)

    # ---- Q projection for this q-tile / head.  wq/bq are pre-scaled by
    # 1/sqrt(D) on the host, so no in-kernel scaling is needed.
    q_start = pl.multiple_of(qi * block_q, block_q)
    x_q = x_ref[0, pl.ds(q_start, block_q), :]                       # [tq, E] bf16
    q = jnp.dot(x_q, wq_ref[h],
                preferred_element_type=jnp.float32) + bq_ref[h]      # [tq, D] f32

    k = k_cache[h]                                                   # [S, D] bf16
    v = v_cache[h]                                                   # [S, D] bf16

    # scores[i, j] = q[i] . k[j]  -- contract last dims, no explicit transpose.
    scores = lax.dot_general(q.astype(k.dtype), k, (((1,), (1,)), ((), ())),
                             preferred_element_type=jnp.float32)     # [tq, S]

    # Causal mask for this q-tile: one (tq, S) col iota + a (tq, 1) row iota.
    col = lax.broadcasted_iota(jnp.int32, (block_q, S), 1)
    row = qi * block_q + lax.broadcasted_iota(jnp.int32, (block_q, 1), 0)
    scores = jnp.where(row >= col, scores, _MASK_VALUE)

    # Numerically stable softmax; normalization folded in AFTER the PV matmul
    # so the reciprocal touches only the [tq, 1] denominator (EUP, approx).
    m = jnp.max(scores, axis=-1, keepdims=True)
    e = jnp.exp(scores - m)
    denom = jnp.sum(e, axis=-1, keepdims=True)

    pv = jnp.dot(e.astype(v.dtype), v,
                 preferred_element_type=jnp.float32)                 # [tq, D]
    head_out = pv * pl.reciprocal(denom, approx=True)                # [tq, D]
    # TODO(synk): attention-weight dropout (training mode) not implemented.

    @pl.when(h == 0)
    def _():
        acc_ref[...] = jnp.zeros_like(acc_ref)

    # Fold this head's slice of the output projection: [tq, D] @ [D, E].
    acc_ref[...] += jnp.dot(head_out.astype(wo_ref.dtype), wo_ref[h],
                            preferred_element_type=jnp.float32)

    @pl.when(h == pl.num_programs(2) - 1)
    def _():
        o_ref[0] = (acc_ref[...] + bo_ref[...]).astype(o_ref.dtype)


def prepare_params(params, num_heads, *, compute_dtype=jnp.bfloat16):
    """One-time repack of PyTorch-style Linear params into head-major layouts.

    PyTorch nn.Linear stores W as [out, in] and computes y = x @ W.T + b.
    The 1/sqrt(head_dim) attention scale is folded into wq/bq here; the matmul
    inputs are stored in `compute_dtype` (bf16 by default) for the MXU.
    """
    E = params["wq"].shape[0]
    assert E % num_heads == 0, "embed_dim must be divisible by num_heads"
    D = E // num_heads
    scale = 1.0 / math.sqrt(D)

    def split_out(w):  # [E_out, E_in] -> W.T -> [E_in, H, D] -> [H, E_in, D]
        return jnp.transpose(w.T.reshape(E, num_heads, D), (1, 0, 2))

    return {
        "wq": (split_out(params["wq"]) * scale).astype(compute_dtype),
        "wk": split_out(params["wk"]).astype(compute_dtype),
        "wv": split_out(params["wv"]).astype(compute_dtype),
        "bq": (params["bq"].reshape(num_heads, 1, D) * scale).astype(jnp.float32),
        "bk": params["bk"].reshape(num_heads, 1, D).astype(jnp.float32),
        "bv": params["bv"].reshape(num_heads, 1, D).astype(jnp.float32),
        # out_proj: y = concat(heads) @ Wo.T ; split Wo.T rows by head.
        "wo": params["wo"].T.reshape(num_heads, D, E).astype(compute_dtype),
        "bo": params["bo"].reshape(1, E).astype(jnp.float32),
    }


def _pick_block_q(S, preferred=256):
    """Largest q-tile that divides S, is a multiple of 8, and is <= preferred."""
    if S <= preferred:
        return S
    for cand in range(preferred, 7, -1):
        if S % cand == 0 and cand % 8 == 0:
            return cand
    return S  # TODO(synk): pad S / masked tail tile for irregular sequence lengths


def masked_mha_pallas(x, packed, num_heads, *, block_q=256):
    """x: [B, S, E] (any float dtype).  packed: output of prepare_params."""
    B, S, E = x.shape
    assert E % num_heads == 0
    D = E // num_heads
    H = num_heads

    block_q = _pick_block_q(S, block_q)
    num_q_tiles = S // block_q

    compute_dtype = packed["wq"].dtype
    x_in = x.astype(compute_dtype)

    kernel = functools.partial(_mha_kernel, block_q=block_q)

    # Whole-array weight specs with constant index_maps: DMA'd once per launch,
    # sliced per head inside the kernel.
    w_spec = pl.BlockSpec((H, E, D), lambda b, qi, h: (0, 0, 0))
    b_spec = pl.BlockSpec((H, 1, D), lambda b, qi, h: (0, 0, 0))

    grid_spec = pltpu.PrefetchScalarGridSpec(
        num_scalar_prefetch=0,
        grid=(B, num_q_tiles, H),
        in_specs=[
            # x: full sequence for the current batch element (q rows are sliced
            # out of this same block in-kernel -> no duplicate q-row stream).
            pl.BlockSpec((1, S, E), lambda b, qi, h: (b, 0, 0)),
            w_spec, b_spec,                                   # wq, bq (pre-scaled)
            w_spec, b_spec,                                   # wk, bk
            w_spec, b_spec,                                   # wv, bv
            pl.BlockSpec((H, D, E), lambda b, qi, h: (0, 0, 0)),  # wo
            pl.BlockSpec((1, E), lambda b, qi, h: (0, 0)),        # bo
        ],
        out_specs=pl.BlockSpec((1, block_q, E), lambda b, qi, h: (b, qi, 0)),
        scratch_shapes=[
            pltpu.VMEM((block_q, E), jnp.float32),            # out-proj accumulator
            pltpu.VMEM((H, S, D), compute_dtype),             # K cache (per batch elt)
            pltpu.VMEM((H, S, D), compute_dtype),             # V cache (per batch elt)
        ],
    )

    return pl.pallas_call(
        kernel,
        out_shape=jax.ShapeDtypeStruct((B, S, E), jnp.float32),
        grid_spec=grid_spec,
        compiler_params=pltpu.CompilerParams(
            # Only the batch axis is parallel: the q-tile axis must stay on one
            # core so the K/V scratch cache filled at qi == 0 remains valid.
            dimension_semantics=("parallel", "arbitrary", "arbitrary"),
            vmem_limit_bytes=48 * 1024 * 1024),
    )(x_in, packed["wq"], packed["bq"], packed["wk"], packed["bk"],
      packed["wv"], packed["bv"], packed["wo"], packed["bo"])


def masked_mha_reference(x, params, num_heads):
    """Plain-JAX f32 reference mirroring the PyTorch forward (eval mode)."""
    B, S, E = x.shape
    D = E // num_heads

    def lin(x, w, b):
        return x @ w.T + b

    q = lin(x, params["wq"], params["bq"]).reshape(B, S, num_heads, D).transpose(0, 2, 1, 3)
    k = lin(x, params["wk"], params["bk"]).reshape(B, S, num_heads, D).transpose(0, 2, 1, 3)
    v = lin(x, params["wv"], params["bv"]).reshape(B, S, num_heads, D).transpose(0, 2, 1, 3)

    attn = jnp.einsum("bhqd,bhkd->bhqk", q, k) / math.sqrt(D)
    mask = jnp.tril(jnp.ones((S, S)))[None, None]
    attn = jnp.where(mask == 0, -jnp.inf, attn)
    attn = jax.nn.softmax(attn, axis=-1)
    out = jnp.einsum("bhqk,bhkd->bhqd", attn, v)
    out = out.transpose(0, 2, 1, 3).reshape(B, S, E)
    return lin(out, params["wo"], params["bo"])


if __name__ == "__main__":
    # Small shapes consistent with the module: batch=2, seq=8, embed_dim=32, heads=4.
    B, S, E, H = 2, 8, 32, 4

    key = jax.random.PRNGKey(0)
    keys = jax.random.split(key, 9)
    scale = 1.0 / math.sqrt(E)
    params = {
        "wq": jax.random.uniform(keys[0], (E, E), jnp.float32, -scale, scale),
        "bq": jax.random.uniform(keys[1], (E,), jnp.float32, -scale, scale),
        "wk": jax.random.uniform(keys[2], (E, E), jnp.float32, -scale, scale),
        "bk": jax.random.uniform(keys[3], (E,), jnp.float32, -scale, scale),
        "wv": jax.random.uniform(keys[4], (E, E), jnp.float32, -scale, scale),
        "bv": jax.random.uniform(keys[5], (E,), jnp.float32, -scale, scale),
        "wo": jax.random.uniform(keys[6], (E, E), jnp.float32, -scale, scale),
        "bo": jax.random.uniform(keys[7], (E,), jnp.float32, -scale, scale),
    }
    x = jax.random.normal(keys[8], (B, S, E), jnp.float32)

    packed = jax.tree_util.tree_map(jax.block_until_ready,
                                    prepare_params(params, num_heads=H))

    out = masked_mha_pallas(x, packed, num_heads=H)
    out = jax.block_until_ready(out)

    ref = masked_mha_reference(x, params, num_heads=H)
    assert out.shape == (B, S, E)
    # bf16 MXU inputs + approx reciprocal -> relaxed tolerance vs. the f32 reference.
    max_err = float(jnp.max(jnp.abs(out - ref)))
    assert jnp.allclose(out, ref, atol=2e-2, rtol=2e-2), f"max abs err = {max_err}"

    print("KERNEL_OK")
</pallas_src>

<mosaic_0001>
module attributes {stable_mosaic.version = 11 : i64} {
  func.func @_mha_kernel(%arg0: i32, %arg1: i32, %arg2: i32, %arg3: memref<1x8x32xbf16, #tpu.memory_space<vmem>>, %arg4: memref<4x32x8xbf16, #tpu.memory_space<vmem>>, %arg5: memref<4x1x8xf32, #tpu.memory_space<vmem>>, %arg6: memref<4x32x8xbf16, #tpu.memory_space<vmem>>, %arg7: memref<4x1x8xf32, #tpu.memory_space<vmem>>, %arg8: memref<4x32x8xbf16, #tpu.memory_space<vmem>>, %arg9: memref<4x1x8xf32, #tpu.memory_space<vmem>>, %arg10: memref<4x8x32xbf16, #tpu.memory_space<vmem>>, %arg11: memref<1x32xf32, #tpu.memory_space<vmem>>, %arg12: memref<1x8x32xf32, #tpu.memory_space<vmem>>, %arg13: memref<8x32xf32, #tpu.memory_space<vmem>>, %arg14: memref<4x8x8xbf16, #tpu.memory_space<vmem>>, %arg15: memref<4x8x8xbf16, #tpu.memory_space<vmem>>) attributes {dimension_semantics = [#tpu.dimension_semantics<parallel>, #tpu.dimension_semantics<arbitrary>, #tpu.dimension_semantics<arbitrary>], iteration_bounds = array<i64: 2, 1, 4>, scalar_prefetch = 0 : i64, scratch_operands = 3 : i64, tpu.core_type = #tpu.core_type<tc>, window_params = [{transform_indices = @transform_0, window_bounds = array<i64: 1, 8, 32>}, {pipeline_mode = #tpu.pipeline_mode<synchronous>, transform_indices = @transform_1, window_bounds = array<i64: 4, 32, 8>}, {pipeline_mode = #tpu.pipeline_mode<synchronous>, transform_indices = @transform_2, window_bounds = array<i64: 4, 1, 8>}, {pipeline_mode = #tpu.pipeline_mode<synchronous>, transform_indices = @transform_3, window_bounds = array<i64: 4, 32, 8>}, {pipeline_mode = #tpu.pipeline_mode<synchronous>, transform_indices = @transform_4, window_bounds = array<i64: 4, 1, 8>}, {pipeline_mode = #tpu.pipeline_mode<synchronous>, transform_indices = @transform_5, window_bounds = array<i64: 4, 32, 8>}, {pipeline_mode = #tpu.pipeline_mode<synchronous>, transform_indices = @transform_6, window_bounds = array<i64: 4, 1, 8>}, {pipeline_mode = #tpu.pipeline_mode<synchronous>, transform_indices = @transform_7, window_bounds = array<i64: 4, 8, 32>}, {pipeline_mode = #tpu.pipeline_mode<synchronous>, transform_indices = @transform_8, window_bounds = array<i64: 1, 32>}, {transform_indices = @transform_9, window_bounds = array<i64: 1, 8, 32>}]} {
    %c0_i32 = arith.constant 0 : i32
    %0 = arith.cmpi eq, %arg1, %c0_i32 : i32
    %1 = arith.extui %0 : i1 to i32
    %c0_i32_0 = arith.constant 0 : i32
    %2 = arith.cmpi ne, %1, %c0_i32_0 : i32
    scf.if %2 {
      %c0_26 = arith.constant 0 : index
      %c0_27 = arith.constant 0 : index
      %c0_28 = arith.constant 0 : index
      %60 = vector.load %arg3[%c0_26, %c0_27, %c0_28] : memref<1x8x32xbf16, #tpu.memory_space<vmem>>, vector<1x8x32xbf16>
      %61 = vector.shape_cast %60 : vector<1x8x32xbf16> to vector<8x32xbf16>
      %62 = arith.index_cast %arg2 : i32 to index
      %c0_29 = arith.constant 0 : index
      %c0_30 = arith.constant 0 : index
      %63 = vector.load %arg6[%62, %c0_29, %c0_30] : memref<4x32x8xbf16, #tpu.memory_space<vmem>>, vector<1x32x8xbf16>
      %64 = vector.shape_cast %63 : vector<1x32x8xbf16> to vector<32x8xbf16>
      %cst_31 = arith.constant dense<0.000000e+00> : vector<8x8xf32>
      %65 = tpu.matmul %61, %64, %cst_31 {dimension_numbers = #tpu.dot_dimension_numbers<[1], [0], [0], [1], [0, 0, 1, 1], [], []>} : vector<8x32xbf16>, vector<32x8xbf16>, vector<8x8xf32> -> vector<8x8xf32>
      %66 = arith.index_cast %arg2 : i32 to index
      %c0_32 = arith.constant 0 : index
      %c0_33 = arith.constant 0 : index
      %67 = vector.load %arg7[%66, %c0_32, %c0_33] : memref<4x1x8xf32, #tpu.memory_space<vmem>>, vector<1x1x8xf32>
      %68 = vector.shape_cast %67 : vector<1x1x8xf32> to vector<1x8xf32>
      %69 = vector.broadcast %68 : vector<1x8xf32> to vector<8x8xf32>
      %70 = arith.addf %65, %69 : vector<8x8xf32>
      %71 = arith.index_cast %arg2 : i32 to index
      %c0_34 = arith.constant 0 : index
      %c0_35 = arith.constant 0 : index
      %72 = vector.load %arg8[%71, %c0_34, %c0_35] : memref<4x32x8xbf16, #tpu.memory_space<vmem>>, vector<1x32x8xbf16>
      %73 = vector.shape_cast %72 : vector<1x32x8xbf16> to vector<32x8xbf16>
      %cst_36 = arith.constant dense<0.000000e+00> : vector<8x8xf32>
      %74 = tpu.matmul %61, %73, %cst_36 {dimension_numbers = #tpu.dot_dimension_numbers<[1], [0], [0], [1], [0, 0, 1, 1], [], []>} : vector<8x32xbf16>, vector<32x8xbf16>, vector<8x8xf32> -> vector<8x8xf32>
      %75 = arith.index_cast %arg2 : i32 to index
      %c0_37 = arith.constant 0 : index
      %c0_38 = arith.constant 0 : index
      %76 = vector.load %arg9[%75, %c0_37, %c0_38] : memref<4x1x8xf32, #tpu.memory_space<vmem>>, vector<1x1x8xf32>
      %77 = vector.shape_cast %76 : vector<1x1x8xf32> to vector<1x8xf32>
      %78 = vector.broadcast %77 : vector<1x8xf32> to vector<8x8xf32>
      %79 = arith.addf %74, %78 : vector<8x8xf32>
      %80 = arith.truncf %70 : vector<8x8xf32> to vector<8x8xbf16>
      %81 = arith.index_cast %arg2 : i32 to index
      %c0_39 = arith.constant 0 : index
      %c0_40 = arith.constant 0 : index
      %82 = vector.load %arg14[%81, %c0_39, %c0_40] : memref<4x8x8xbf16, #tpu.memory_space<vmem>>, vector<1x8x8xbf16>
      %83 = vector.shape_cast %82 : vector<1x8x8xbf16> to vector<8x8xbf16>
      %84 = vector.shape_cast %80 : vector<8x8xbf16> to vector<1x8x8xbf16>
      tpu.vector_store %arg14[%81, %c0_39, %c0_40], %84 {strides = array<i32>} : memref<4x8x8xbf16, #tpu.memory_space<vmem>>, vector<1x8x8xbf16>,
      %85 = arith.truncf %79 : vector<8x8xf32> to vector<8x8xbf16>
      %86 = arith.index_cast %arg2 : i32 to index
      %c0_41 = arith.constant 0 : index
      %c0_42 = arith.constant 0 : index
      %87 = vector.load %arg15[%86, %c0_41, %c0_42] : memref<4x8x8xbf16, #tpu.memory_space<vmem>>, vector<1x8x8xbf16>
      %88 = vector.shape_cast %87 : vector<1x8x8xbf16> to vector<8x8xbf16>
      %89 = vector.shape_cast %85 : vector<8x8xbf16> to vector<1x8x8xbf16>
      tpu.vector_store %arg15[%86, %c0_41, %c0_42], %89 {strides = array<i32>} : memref<4x8x8xbf16, #tpu.memory_space<vmem>>, vector<1x8x8xbf16>,
    } else {
    }
    %c8_i32 = arith.constant 8 : i32
    %3 = arith.muli %arg1, %c8_i32 : i32
    %4 = tpu.assume_multiple %3, 8 : i32
    %c0 = arith.constant 0 : index
    %5 = arith.index_cast %4 : i32 to index
    %c0_1 = arith.constant 0 : index
    %6 = vector.load %arg3[%c0, %5, %c0_1] : memref<1x8x32xbf16, #tpu.memory_space<vmem>>, vector<1x8x32xbf16>
    %7 = vector.shape_cast %6 : vector<1x8x32xbf16> to vector<8x32xbf16>
    %8 = arith.index_cast %arg2 : i32 to index
    %c0_2 = arith.constant 0 : index
    %c0_3 = arith.constant 0 : index
    %9 = vector.load %arg4[%8, %c0_2, %c0_3] : memref<4x32x8xbf16, #tpu.memory_space<vmem>>, vector<1x32x8xbf16>
    %10 = vector.shape_cast %9 : vector<1x32x8xbf16> to vector<32x8xbf16>
    %cst = arith.constant dense<0.000000e+00> : vector<8x8xf32>
    %11 = tpu.matmul %7, %10, %cst {dimension_numbers = #tpu.dot_dimension_numbers<[1], [0], [0], [1], [0, 0, 1, 1], [], []>} : vector<8x32xbf16>, vector<32x8xbf16>, vector<8x8xf32> -> vector<8x8xf32>
    %12 = arith.index_cast %arg2 : i32 to index
    %c0_4 = arith.constant 0 : index
    %c0_5 = arith.constant 0 : index
    %13 = vector.load %arg5[%12, %c0_4, %c0_5] : memref<4x1x8xf32, #tpu.memory_space<vmem>>, vector<1x1x8xf32>
    %14 = vector.shape_cast %13 : vector<1x1x8xf32> to vector<1x8xf32>
    %15 = vector.broadcast %14 : vector<1x8xf32> to vector<8x8xf32>
    %16 = arith.addf %11, %15 : vector<8x8xf32>
    %17 = arith.index_cast %arg2 : i32 to index
    %c0_6 = arith.constant 0 : index
    %c0_7 = arith.constant 0 : index
    %18 = vector.load %arg14[%17, %c0_6, %c0_7] : memref<4x8x8xbf16, #tpu.memory_space<vmem>>, vector<1x8x8xbf16>
    %19 = vector.shape_cast %18 : vector<1x8x8xbf16> to vector<8x8xbf16>
    %20 = arith.index_cast %arg2 : i32 to index
    %c0_8 = arith.constant 0 : index
    %c0_9 = arith.constant 0 : index
    %21 = vector.load %arg15[%20, %c0_8, %c0_9] : memref<4x8x8xbf16, #tpu.memory_space<vmem>>, vector<1x8x8xbf16>
    %22 = vector.shape_cast %21 : vector<1x8x8xbf16> to vector<8x8xbf16>
    %23 = arith.truncf %16 : vector<8x8xf32> to vector<8x8xbf16>
    %cst_10 = arith.constant dense<0.000000e+00> : vector<8x8xf32>
    %24 = tpu.matmul %23, %19, %cst_10 {dimension_numbers = #tpu.dot_dimension_numbers<[1], [1], [0], [0], [0, 0, 1, 0], [], []>} : vector<8x8xbf16>, vector<8x8xbf16>, vector<8x8xf32> -> vector<8x8xf32>
    %25 = tpu.iota {dimensions = array<i32: 1>} : vector<8x8xi32>
    %c8_i32_11 = arith.constant 8 : i32
    %26 = arith.muli %arg1, %c8_i32_11 : i32
    %27 = tpu.iota {dimensions = array<i32: 0>} : vector<8x1xi32>
    %28 = vector.broadcast %26 : i32 to vector<8x1xi32>
    %29 = arith.addi %28, %27 : vector<8x1xi32>
    %30 = vector.broadcast %29 : vector<8x1xi32> to vector<8x8xi32>
    %31 = arith.cmpi sge, %30, %25 : vector<8x8xi32>
    %cst_12 = arith.constant -1.000000e+30 : f32
    %32 = vector.broadcast %cst_12 : f32 to vector<8x8xf32>
    %33 = arith.select %31, %24, %32 : vector<8x8xi1>, vector<8x8xf32>
    %cst_13 = arith.constant dense<0xFF800000> : vector<8xf32>
    %34 = vector.multi_reduction <maximumf>, %33, %cst_13 [1] : vector<8x8xf32> to vector<8xf32>
    %35 = vector.shape_cast %34 : vector<8xf32> to vector<8x1xf32>
    %36 = vector.broadcast %35 : vector<8x1xf32> to vector<8x8xf32>
    %37 = arith.subf %33, %36 : vector<8x8xf32>
    %38 = math.exp %37 : vector<8x8xf32>
    %cst_14 = arith.constant dense<0.000000e+00> : vector<8xf32>
    %39 = vector.multi_reduction <add>, %38, %cst_14 [1] : vector<8x8xf32> to vector<8xf32>
    %40 = vector.shape_cast %39 : vector<8xf32> to vector<8x1xf32>
    %41 = arith.truncf %38 : vector<8x8xf32> to vector<8x8xbf16>
    %cst_15 = arith.constant dense<0.000000e+00> : vector<8x8xf32>
    %42 = tpu.matmul %41, %22, %cst_15 {dimension_numbers = #tpu.dot_dimension_numbers<[1], [0], [0], [1], [0, 0, 1, 1], [], []>} : vector<8x8xbf16>, vector<8x8xbf16>, vector<8x8xf32> -> vector<8x8xf32>
    %43 = tpu.reciprocal %40 {approx = true} : vector<8x1xf32> -> vector<8x1xf32>
    %44 = vector.broadcast %43 : vector<8x1xf32> to vector<8x8xf32>
    %45 = arith.mulf %42, %44 : vector<8x8xf32>
    %c0_i32_16 = arith.constant 0 : i32
    %46 = arith.cmpi eq, %arg2, %c0_i32_16 : i32
    %47 = arith.extui %46 : i1 to i32
    %c0_i32_17 = arith.constant 0 : i32
    %48 = arith.cmpi ne, %47, %c0_i32_17 : i32
    scf.if %48 {
      %cst_26 = arith.constant 0.000000e+00 : f32
      %60 = vector.broadcast %cst_26 : f32 to vector<8x32xf32>
      %c0_27 = arith.constant 0 : index
      %c0_28 = arith.constant 0 : index
      %61 = vector.load %arg13[%c0_27, %c0_28] : memref<8x32xf32, #tpu.memory_space<vmem>>, vector<8x32xf32>
      tpu.vector_store %arg13[%c0_27, %c0_28], %60 {strides = array<i32>} : memref<8x32xf32, #tpu.memory_space<vmem>>, vector<8x32xf32>,
    } else {
    }
    %c0_18 = arith.constant 0 : index
    %c0_19 = arith.constant 0 : index
    %49 = vector.load %arg13[%c0_18, %c0_19] : memref<8x32xf32, #tpu.memory_space<vmem>>, vector<8x32xf32>
    %50 = arith.truncf %45 : vector<8x8xf32> to vector<8x8xbf16>
    %51 = arith.index_cast %arg2 : i32 to index
    %c0_20 = arith.constant 0 : index
    %c0_21 = arith.constant 0 : index
    %52 = vector.load %arg10[%51, %c0_20, %c0_21] : memref<4x8x32xbf16, #tpu.memory_space<vmem>>, vector<1x8x32xbf16>
    %53 = vector.shape_cast %52 : vector<1x8x32xbf16> to vector<8x32xbf16>
    %cst_22 = arith.constant dense<0.000000e+00> : vector<8x32xf32>
    %54 = tpu.matmul %50, %53, %cst_22 {dimension_numbers = #tpu.dot_dimension_numbers<[1], [0], [0], [1], [0, 0, 1, 1], [], []>} : vector<8x8xbf16>, vector<8x32xbf16>, vector<8x32xf32> -> vector<8x32xf32>
    %55 = arith.addf %49, %54 : vector<8x32xf32>
    %c0_23 = arith.constant 0 : index
    %c0_24 = arith.constant 0 : index
    %56 = vector.load %arg13[%c0_23, %c0_24] : memref<8x32xf32, #tpu.memory_space<vmem>>, vector<8x32xf32>
    tpu.vector_store %arg13[%c0_23, %c0_24], %55 {strides = array<i32>} : memref<8x32xf32, #tpu.memory_space<vmem>>, vector<8x32xf32>,
    %c3_i32 = arith.constant 3 : i32
    %57 = arith.cmpi eq, %arg2, %c3_i32 : i32
    %58 = arith.extui %57 : i1 to i32
    %c0_i32_25 = arith.constant 0 : i32
    %59 = arith.cmpi ne, %58, %c0_i32_25 : i32
    scf.if %59 {
      %c0_26 = arith.constant 0 : index
      %c0_27 = arith.constant 0 : index
      %60 = vector.load %arg13[%c0_26, %c0_27] : memref<8x32xf32, #tpu.memory_space<vmem>>, vector<8x32xf32>
      %c0_28 = arith.constant 0 : index
      %c0_29 = arith.constant 0 : index
      %61 = vector.load %arg11[%c0_28, %c0_29] : memref<1x32xf32, #tpu.memory_space<vmem>>, vector<1x32xf32>
      %62 = vector.broadcast %61 : vector<1x32xf32> to vector<8x32xf32>
      %63 = arith.addf %60, %62 : vector<8x32xf32>
      %c0_30 = arith.constant 0 : index
      %c0_31 = arith.constant 0 : index
      %c0_32 = arith.constant 0 : index
      %64 = vector.load %arg12[%c0_30, %c0_31, %c0_32] : memref<1x8x32xf32, #tpu.memory_space<vmem>>, vector<1x8x32xf32>
      %65 = vector.shape_cast %64 : vector<1x8x32xf32> to vector<8x32xf32>
      %66 = vector.shape_cast %63 : vector<8x32xf32> to vector<1x8x32xf32>
      tpu.vector_store %arg12[%c0_30, %c0_31, %c0_32], %66 {strides = array<i32>} : memref<1x8x32xf32, #tpu.memory_space<vmem>>, vector<1x8x32xf32>,
    } else {
    }
    return
  }
  func.func @transform_0(%arg0: i32, %arg1: i32, %arg2: i32) -> (i32, i32, i32) {
    %c0_i32 = arith.constant 0 : i32
    %c0_i32_0 = arith.constant 0 : i32
    %c0_i32_1 = arith.constant 0 : i32
    return %arg0, %c0_i32, %c0_i32_0 : i32, i32, i32
  }
  func.func @transform_1(%arg0: i32, %arg1: i32, %arg2: i32) -> (i32, i32, i32) {
    %c0_i32 = arith.constant 0 : i32
    %c0_i32_0 = arith.constant 0 : i32
    %c0_i32_1 = arith.constant 0 : i32
    %c0_i32_2 = arith.constant 0 : i32
    return %c0_i32, %c0_i32_0, %c0_i32_1 : i32, i32, i32
  }
  func.func @transform_2(%arg0: i32, %arg1: i32, %arg2: i32) -> (i32, i32, i32) {
    %c0_i32 = arith.constant 0 : i32
    %c0_i32_0 = arith.constant 0 : i32
    %c0_i32_1 = arith.constant 0 : i32
    %c0_i32_2 = arith.constant 0 : i32
    return %c0_i32, %c0_i32_0, %c0_i32_1 : i32, i32, i32
  }
  func.func @transform_3(%arg0: i32, %arg1: i32, %arg2: i32) -> (i32, i32, i32) {
    %c0_i32 = arith.constant 0 : i32
    %c0_i32_0 = arith.constant 0 : i32
    %c0_i32_1 = arith.constant 0 : i32
    %c0_i32_2 = arith.constant 0 : i32
    return %c0_i32, %c0_i32_0, %c0_i32_1 : i32, i32, i32
  }
  func.func @transform_4(%arg0: i32, %arg1: i32, %arg2: i32) -> (i32, i32, i32) {
    %c0_i32 = arith.constant 0 : i32
    %c0_i32_0 = arith.constant 0 : i32
    %c0_i32_1 = arith.constant 0 : i32
    %c0_i32_2 = arith.constant 0 : i32
    return %c0_i32, %c0_i32_0, %c0_i32_1 : i32, i32, i32
  }
  func.func @transform_5(%arg0: i32, %arg1: i32, %arg2: i32) -> (i32, i32, i32) {
    %c0_i32 = arith.constant 0 : i32
    %c0_i32_0 = arith.constant 0 : i32
    %c0_i32_1 = arith.constant 0 : i32
    %c0_i32_2 = arith.constant 0 : i32
    return %c0_i32, %c0_i32_0, %c0_i32_1 : i32, i32, i32
  }
  func.func @transform_6(%arg0: i32, %arg1: i32, %arg2: i32) -> (i32, i32, i32) {
    %c0_i32 = arith.constant 0 : i32
    %c0_i32_0 = arith.constant 0 : i32
    %c0_i32_1 = arith.constant 0 : i32
    %c0_i32_2 = arith.constant 0 : i32
    return %c0_i32, %c0_i32_0, %c0_i32_1 : i32, i32, i32
  }
  func.func @transform_7(%arg0: i32, %arg1: i32, %arg2: i32) -> (i32, i32, i32) {
    %c0_i32 = arith.constant 0 : i32
    %c0_i32_0 = arith.constant 0 : i32
    %c0_i32_1 = arith.constant 0 : i32
    %c0_i32_2 = arith.constant 0 : i32
    return %c0_i32, %c0_i32_0, %c0_i32_1 : i32, i32, i32
  }
  func.func @transform_8(%arg0: i32, %arg1: i32, %arg2: i32) -> (i32, i32) {
    %c0_i32 = arith.constant 0 : i32
    %c0_i32_0 = arith.constant 0 : i32
    %c0_i32_1 = arith.constant 0 : i32
    return %c0_i32, %c0_i32_0 : i32, i32
  }
  func.func @transform_9(%arg0: i32, %arg1: i32, %arg2: i32) -> (i32, i32, i32) {
    %c0_i32 = arith.constant 0 : i32
    %c0_i32_0 = arith.constant 0 : i32
    return %arg0, %arg1, %c0_i32 : i32, i32, i32
  }
}

</mosaic_0001>

<llo_original>
// kernel: tpu_custom_call.1
$region0: #{tpu_custom_call.1}
  #allocation0 [shape = 'u32[]', space=smem, size = 0x4, offset = 0x4, fixed_abs, tag = 'smem constant byte address 0x4 - core index']
  #allocation1 [shape = 'u32[144,128]{1,0:T(1,128)}', space=vmem, size = 0x12000, scoped, tag = 'internal scratch']
  #allocation2 [shape = 'f32[8,32]{1,0:T(8,128)}', space=vmem, size = 0x1000, scoped, tag = 'scratch operand']
  #allocation3 [shape = 'bf16[4,8,8]{2,1,0:T(8,128)(2,1)}', space=vmem, size = 0x2000, scoped, tag = 'scratch operand']
  #allocation4 [shape = 'bf16[4,8,8]{2,1,0:T(8,128)(2,1)}', space=vmem, size = 0x2000, scoped, tag = 'scratch operand']
  %s0 = inlined_call_operand.vmem [shape: bf16[2,8,32], index: 0, kind: input, shape index: {}]
  %s1 = inlined_call_operand.vmem [shape: bf16[4,32,8], index: 1, kind: input, shape index: {}]
  %s2 = inlined_call_operand.vmem [shape: f32[4,1,8], index: 2, kind: input, shape index: {}]
  %s3 = inlined_call_operand.vmem [shape: bf16[4,32,8], index: 3, kind: input, shape index: {}]
  %s4 = inlined_call_operand.vmem [shape: f32[4,1,8], index: 4, kind: input, shape index: {}]
  %s5 = inlined_call_operand.vmem [shape: bf16[4,32,8], index: 5, kind: input, shape index: {}]
  %s6 = inlined_call_operand.vmem [shape: f32[4,1,8], index: 6, kind: input, shape index: {}]
  %s7 = inlined_call_operand.vmem [shape: bf16[4,8,32], index: 7, kind: input, shape index: {}]
  %s8 = inlined_call_operand.vmem [shape: f32[1,32], index: 8, kind: input, shape index: {}]
  %s9 = inlined_call_operand.hbm [shape: f32[2,8,32], index: 9, kind: output, shape index: {}]
  %s10 = sld [smem:[#allocation0]]
  $region81: #{tpu_custom_call.1} parent=0
    _
  %s12 = ssub.s32 1, %s10
  %s13 = scalar_select 0, %s12, %s10
  $region1: #{tpu_custom_call.1} parent=0
    #allocation5 [shape = 'u8[8192]{0}', space=vmem, size = 0x2000, scoped, tag = 'output window, operand 0']
    #allocation6 [shape = 's32[2]{0}', space=sflag, size = 0x8, scoped, tag = 'scoped memory for tpu_custom_call.1']
    %14 = vsyncpa [#allocation6], 0
    %s15 = scalar_lea.sflag [#allocation6], 1
    %16 = vsyncpa %s15, 0
    loop: start=0, step=1, limit=10
    $region2: #{tpu_custom_call.1} parent=1 // loop_pre_header
      _
    $region3: #{tpu_custom_call.1} parent=1 // loop_header
      %s18 = sphi 0, %s22
      %p19 = scmp.ge.s32.totalorder %s18, 10
      %s25 = sphi 0, %s44
      %s26 = sphi 0, %s40
      %s27 = sphi 0, %s36
      %s28 = sphi 0, %s25
      %s29 = sphi 0, %s26
      %s30 = sphi 0, %s27
      %s31 = sphi 0, %s28
      %s32 = sphi 0, %s29
      %s33 = sphi 0, %s30
      %s47 = sphi 0, %s49
      %s50 = sphi 0, %s47
      %s51 = sphi 0, %s50
      %s67 = sphi 0, %s51
      %s71 = sphi 0, %s71
      %s73 = sphi 0, %s71
      %s74 = sphi 0, %s73
      %s88 = sphi 0, %s74
      %s92 = sphi 0, %s92
      %s94 = sphi 0, %s92
      %s95 = sphi 0, %s94
      %s109 = sphi 0, %s95
      %s113 = sphi 0, %s113
      %s115 = sphi 0, %s113
      %s116 = sphi 0, %s115
      %s130 = sphi 0, %s116
      %s134 = sphi 0, %s134
      %s136 = sphi 0, %s134
      %s137 = sphi 0, %s136
      %s151 = sphi 0, %s137
      %s155 = sphi 0, %s155
      %s157 = sphi 0, %s155
      %s158 = sphi 0, %s157
      %s172 = sphi 0, %s158
      %s176 = sphi 0, %s176
      %s178 = sphi 0, %s176
      %s179 = sphi 0, %s178
      %s193 = sphi 0, %s179
      %s197 = sphi 0, %s197
      %s199 = sphi 0, %s197
      %s200 = sphi 0, %s199
      %s214 = sphi 0, %s200
      %s218 = sphi 0, %s218
      %s220 = sphi 0, %s218
      %s221 = sphi 0, %s220
      %s235 = sphi 0, %s221
      %s243 = sphi 0, %s245
      %s246 = sphi 0, %s243
      %s247 = sphi 0, %s246
      %s263 = sphi 0, %s247
    $region4: #{tpu_custom_call.1} parent=1 // loop_header_branch
      %21 = sbr.rel (%p19) target = $region8
    $region5: #{tpu_custom_call.1} parent=1 // loop_body
      %s23 = ssub.s32 %s18, 1
      %s24 = ssub.s32 %s18, 2
      %s34 = sadd.s32 1, %s27
      %p35 = scmp.ge.s32.totalorder %s34, 4
      %s36 = scalar_select %p35, 0, %s34
      %s37 = sadd.s32 1, %s26
      %s38 = scalar_select %p35, %s37, %s26
      %p39 = scmp.ge.s32.totalorder %s38, 1
      %s40 = scalar_select %p39, 0, %s38
      %s41 = sadd.s32 1, %s25
      %s42 = scalar_select %p39, %s41, %s25
      %p43 = scmp.ge.s32.totalorder %s42, 2
      %s44 = scalar_select %p43, 0, %s42
      %s45 = ssub.s32 %s25, %s44
      %p46 = scmp.eq.s32.totalorder %s45, 0
      %s48 = sadd.s32 %s47, 1
      %s49 = scalar_select %p46, %s47, %s48
      %p52 = pneg %p46
      %p53 = scmp.eq.s32.totalorder %s18, 7
      %p54 = por %p52, %p53
      %p55 = scmp.ne.s32.totalorder %s47, %s50
      %p56 = scmp.eq.s32.totalorder %s18, 0
      %p57 = por %p55, %p56
      %p58 = scmp.ne.s32.totalorder %s47, %s50
      %p59 = scmp.eq.s32.totalorder %s23, 7
      %p60 = por %p58, %p59
      %p61 = scmp.ne.s32.totalorder %s50, %s51
      %p62 = scmp.eq.s32.totalorder %s23, 0
      %p63 = por %p61, %p62
      %p64 = scmp.ne.s32.totalorder %s50, %s51
      %p65 = scmp.eq.s32.totalorder %s24, 7
      %p66 = por %p64, %p65
      %p68 = scmp.ne.s32.totalorder %s51, %s67
      %p69 = scmp.eq.s32.totalorder %s24, 0
      %p70 = por %p68, %p69
      %s72 = sadd.s32 %s71, 1
      %p75 = scmp.eq.s32.totalorder %s18, 7
      %p76 = scmp.ne.s32.totalorder %s71, %s73
      %p77 = scmp.eq.s32.totalorder %s18, 0
      %p78 = por %p76, %p77
      %p79 = scmp.ne.s32.totalorder %s71, %s73
      %p80 = scmp.eq.s32.totalorder %s23, 7
      %p81 = por %p79, %p80
      %p82 = scmp.ne.s32.totalorder %s73, %s74
      %p83 = scmp.eq.s32.totalorder %s23, 0
      %p84 = por %p82, %p83
      %p85 = scmp.ne.s32.totalorder %s73, %s74
      %p86 = scmp.eq.s32.totalorder %s24, 7
      %p87 = por %p85, %p86
      %p89 = scmp.ne.s32.totalorder %s74, %s88
      %p90 = scmp.eq.s32.totalorder %s24, 0
      %p91 = por %p89, %p90
      %s93 = sadd.s32 %s92, 1
      %p96 = scmp.eq.s32.totalorder %s18, 7
      %p97 = scmp.ne.s32.totalorder %s92, %s94
      %p98 = scmp.eq.s32.totalorder %s18, 0
      %p99 = por %p97, %p98
      %p100 = scmp.ne.s32.totalorder %s92, %s94
      %p101 = scmp.eq.s32.totalorder %s23, 7
      %p102 = por %p100, %p101
      %p103 = scmp.ne.s32.totalorder %s94, %s95
      %p104 = scmp.eq.s32.totalorder %s23, 0
      %p105 = por %p103, %p104
      %p106 = scmp.ne.s32.totalorder %s94, %s95
      %p107 = scmp.eq.s32.totalorder %s24, 7
      %p108 = por %p106, %p107
      %p110 = scmp.ne.s32.totalorder %s95, %s109
      %p111 = scmp.eq.s32.totalorder %s24, 0
      %p112 = por %p110, %p111
      %s114 = sadd.s32 %s113, 1
      %p117 = scmp.eq.s32.totalorder %s18, 7
      %p118 = scmp.ne.s32.totalorder %s113, %s115
      %p119 = scmp.eq.s32.totalorder %s18, 0
      %p120 = por %p118, %p119
      %p121 = scmp.ne.s32.totalorder %s113, %s115
      %p122 = scmp.eq.s32.totalorder %s23, 7
      %p123 = por %p121, %p122
      %p124 = scmp.ne.s32.totalorder %s115, %s116
      %p125 = scmp.eq.s32.totalorder %s23, 0
      %p126 = por %p124, %p125
      %p127 = scmp.ne.s32.totalorder %s115, %s116
      %p128 = scmp.eq.s32.totalorder %s24, 7
      %p129 = por %p127, %p128
      %p131 = scmp.ne.s32.totalorder %s116, %s130
      %p132 = scmp.eq.s32.totalorder %s24, 0
      %p133 = por %p131, %p132
      %s135 = sadd.s32 %s134, 1
      %p138 = scmp.eq.s32.totalorder %s18, 7
      %p139 = scmp.ne.s32.totalorder %s134, %s136
      %p140 = scmp.eq.s32.totalorder %s18, 0
      %p141 = por %p139, %p140
      %p142 = scmp.ne.s32.totalorder %s134, %s136
      %p143 = scmp.eq.s32.totalorder %s23, 7
      %p144 = por %p142, %p143
      %p145 = scmp.ne.s32.totalorder %s136, %s137
      %p146 = scmp.eq.s32.totalorder %s23, 0
      %p147 = por %p145, %p146
      %p148 = scmp.ne.s32.totalorder %s136, %s137
      %p149 = scmp.eq.s32.totalorder %s24, 7
      %p150 = por %p148, %p149
      %p152 = scmp.ne.s32.totalorder %s137, %s151
      %p153 = scmp.eq.s32.totalorder %s24, 0
      %p154 = por %p152, %p153
      %s156 = sadd.s32 %s155, 1
      %p159 = scmp.eq.s32.totalorder %s18, 7
      %p160 = scmp.ne.s32.totalorder %s155, %s157
      %p161 = scmp.eq.s32.totalorder %s18, 0
      %p162 = por %p160, %p161
      %p163 = scmp.ne.s32.totalorder %s155, %s157
      %p164 = scmp.eq.s32.totalorder %s23, 7
      %p165 = por %p163, %p164
      %p166 = scmp.ne.s32.totalorder %s157, %s158
      %p167 = scmp.eq.s32.totalorder %s23, 0
      %p168 = por %p166, %p167
      %p169 = scmp.ne.s32.totalorder %s157, %s158
      %p170 = scmp.eq.s32.totalorder %s24, 7
      %p171 = por %p169, %p170
      %p173 = scmp.ne.s32.totalorder %s158, %s172
      %p174 = scmp.eq.s32.totalorder %s24, 0
      %p175 = por %p173, %p174
      %s177 = sadd.s32 %s176, 1
      %p180 = scmp.eq.s32.totalorder %s18, 7
      %p181 = scmp.ne.s32.totalorder %s176, %s178
      %p182 = scmp.eq.s32.totalorder %s18, 0
      %p183 = por %p181, %p182
      %p184 = scmp.ne.s32.totalorder %s176, %s178
      %p185 = scmp.eq.s32.totalorder %s23, 7
      %p186 = por %p184, %p185
      %p187 = scmp.ne.s32.totalorder %s178, %s179
      %p188 = scmp.eq.s32.totalorder %s23, 0
      %p189 = por %p187, %p188
      %p190 = scmp.ne.s32.totalorder %s178, %s179
      %p191 = scmp.eq.s32.totalorder %s24, 7
      %p192 = por %p190, %p191
      %p194 = scmp.ne.s32.totalorder %s179, %s193
      %p195 = scmp.eq.s32.totalorder %s24, 0
      %p196 = por %p194, %p195
      %s198 = sadd.s32 %s197, 1
      %p201 = scmp.eq.s32.totalorder %s18, 7
      %p202 = scmp.ne.s32.totalorder %s197, %s199
      %p203 = scmp.eq.s32.totalorder %s18, 0
      %p204 = por %p202, %p203
      %p205 = scmp.ne.s32.totalorder %s197, %s199
      %p206 = scmp.eq.s32.totalorder %s23, 7
      %p207 = por %p205, %p206
      %p208 = scmp.ne.s32.totalorder %s199, %s200
      %p209 = scmp.eq.s32.totalorder %s23, 0
      %p210 = por %p208, %p209
      %p211 = scmp.ne.s32.totalorder %s199, %s200
      %p212 = scmp.eq.s32.totalorder %s24, 7
      %p213 = por %p211, %p212
      %p215 = scmp.ne.s32.totalorder %s200, %s214
      %p216 = scmp.eq.s32.totalorder %s24, 0
      %p217 = por %p215, %p216
      %s219 = sadd.s32 %s218, 1
      %p222 = scmp.eq.s32.totalorder %s18, 7
      %p223 = scmp.ne.s32.totalorder %s218, %s220
      %p224 = scmp.eq.s32.totalorder %s18, 0
      %p225 = por %p223, %p224
      %p226 = scmp.ne.s32.totalorder %s218, %s220
      %p227 = scmp.eq.s32.totalorder %s23, 7
      %p228 = por %p226, %p227
      %p229 = scmp.ne.s32.totalorder %s220, %s221
      %p230 = scmp.eq.s32.totalorder %s23, 0
      %p231 = por %p229, %p230
      %p232 = scmp.ne.s32.totalorder %s220, %s221
      %p233 = scmp.eq.s32.totalorder %s24, 7
      %p234 = por %p232, %p233
      %p236 = scmp.ne.s32.totalorder %s221, %s235
      %p237 = scmp.eq.s32.totalorder %s24, 0
      %p238 = por %p236, %p237
      %s239 = ssub.s32 %s25, %s44
      %s240 = ssub.s32 %s26, %s40
      %s241 = sor.u32 %s239, %s240
      %p242 = scmp.eq.s32.totalorder %s241, 0
      %s244 = sadd.s32 %s243, 1
      %s245 = scalar_select %p242, %s243, %s244
      %p248 = pneg %p242
      %p249 = scmp.eq.s32.totalorder %s18, 7
      %p250 = por %p248, %p249
      %p251 = scmp.ne.s32.totalorder %s243, %s246
      %p252 = scmp.eq.s32.totalorder %s18, 0
      %p253 = por %p251, %p252
      %p254 = scmp.ne.s32.totalorder %s243, %s246
      %p255 = scmp.eq.s32.totalorder %s23, 7
      %p256 = por %p254, %p255
      %p257 = scmp.ne.s32.totalorder %s246, %s247
      %p258 = scmp.eq.s32.totalorder %s23, 0
      %p259 = por %p257, %p258
      %p260 = scmp.ne.s32.totalorder %s246, %s247
      %p261 = scmp.eq.s32.totalorder %s24, 7
      %p262 = por %p260, %p261
      %p264 = scmp.ne.s32.totalorder %s247, %s263
      %p265 = scmp.eq.s32.totalorder %s24, 0
      %p266 = por %p264, %p265
      %p267 = scmp.le.s32.totalorder 1, %s18
      %p268 = scmp.lt.s32.totalorder %s18, 9
      %p269 = pnand %p267, %p268
      %p270 = pneg %p269
      // Predicated region
      $region9: #{tpu_custom_call.1} parent=5 // pred_check
        _
      $region10: #{tpu_custom_call.1} parent=5 // pred_check_branch
        %272 = sbr.rel (%p269) target = $region12
      $region11: #{tpu_custom_call.1} parent=5 // pred_region
        %s273 = ssub.s32 %s18, 1
        // Predicated region
        $region13: #{tpu_custom_call.1} parent=11 // pred_check
          %p274 = pneg %p84
        $region14: #{tpu_custom_call.1} parent=11 // pred_check_branch
          %276 = sbr.rel (%p274) target = $region16
        $region15: #{tpu_custom_call.1} parent=11 // pred_region
          _
        $region16: #{tpu_custom_call.1} parent=11 // pred_fallthru
          _
        // Predicated region
        $region17: #{tpu_custom_call.1} parent=11 // pred_check
          %p277 = pneg %p105
        $region18: #{tpu_custom_call.1} parent=11 // pred_check_branch
          %279 = sbr.rel (%p277) target = $region20
        $region19: #{tpu_custom_call.1} parent=11 // pred_region
          _
        $region20: #{tpu_custom_call.1} parent=11 // pred_fallthru
          _
        // Predicated region
        $region21: #{tpu_custom_call.1} parent=11 // pred_check
          %p280 = pneg %p126
        $region22: #{tpu_custom_call.1} parent=11 // pred_check_branch
          %282 = sbr.rel (%p280) target = $region24
        $region23: #{tpu_custom_call.1} parent=11 // pred_region
          _
        $region24: #{tpu_custom_call.1} parent=11 // pred_fallthru
          _
        // Predicated region
        $region25: #{tpu_custom_call.1} parent=11 // pred_check
          %p283 = pneg %p147
        $region26: #{tpu_custom_call.1} parent=11 // pred_check_branch
          %285 = sbr.rel (%p283) target = $region28
        $region27: #{tpu_custom_call.1} parent=11 // pred_region
          _
        $region28: #{tpu_custom_call.1} parent=11 // pred_fallthru
          _
        // Predicated region
        $region29: #{tpu_custom_call.1} parent=11 // pred_check
          %p286 = pneg %p168
        $region30: #{tpu_custom_call.1} parent=11 // pred_check_branch
          %288 = sbr.rel (%p286) target = $region32
        $region31: #{tpu_custom_call.1} parent=11 // pred_region
          _
        $region32: #{tpu_custom_call.1} parent=11 // pred_fallthru
          _
        // Predicated region
        $region33: #{tpu_custom_call.1} parent=11 // pred_check
          %p289 = pneg %p189
        $region34: #{tpu_custom_call.1} parent=11 // pred_check_branch
          %291 = sbr.rel (%p289) target = $region36
        $region35: #{tpu_custom_call.1} parent=11 // pred_region
          _
        $region36: #{tpu_custom_call.1} parent=11 // pred_fallthru
          _
        // Predicated region
        $region37: #{tpu_custom_call.1} parent=11 // pred_check
          %p292 = pneg %p210
        $region38: #{tpu_custom_call.1} parent=11 // pred_check_branch
          %294 = sbr.rel (%p292) target = $region40
        $region39: #{tpu_custom_call.1} parent=11 // pred_region
          _
        $region40: #{tpu_custom_call.1} parent=11 // pred_fallthru
          _
        // Predicated region
        $region41: #{tpu_custom_call.1} parent=11 // pred_check
          %p295 = pneg %p231
        $region42: #{tpu_custom_call.1} parent=11 // pred_check_branch
          %297 = sbr.rel (%p295) target = $region44
        $region43: #{tpu_custom_call.1} parent=11 // pred_region
          _
        $region44: #{tpu_custom_call.1} parent=11 // pred_fallthru
          _
      $region12: #{tpu_custom_call.1} parent=5 // pred_fallthru
        _
      %p298 = scmp.lt.s32.totalorder %s18, 8
      // Predicated region
      $region45: #{tpu_custom_call.1} parent=5 // pred_check
        %p299 = pneg %p298
      $region46: #{tpu_custom_call.1} parent=5 // pred_check_branch
        %301 = sbr.rel (%p299) target = $region48
      $region47: #{tpu_custom_call.1} parent=5 // pred_region
        // Predicated region
        $region49: #{tpu_custom_call.1} parent=47 // pred_check
          %p302 = pneg %p57
        $region50: #{tpu_custom_call.1} parent=47 // pred_check_branch
          %304 = sbr.rel (%p302) target = $region52
        $region51: #{tpu_custom_call.1} parent=47 // pred_region
          %p305 = scmp.lt.s32.totalorder %s25, 1
          %s306 = scalar_select %p305, %s25, 1
          %s307 = smul.addr %s306, 4
          %s308 = scalar_lea.vmem %s0, %s307
        $region52: #{tpu_custom_call.1} parent=47 // pred_fallthru
          _
      $region48: #{tpu_custom_call.1} parent=5 // pred_fallthru
        _
      %p309 = scmp.le.s32.totalorder 1, %s18
      %p310 = scmp.lt.s32.totalorder %s18, 9
      %p311 = pnand %p309, %p310
      %p312 = pneg %p311
      // Predicated region
      $region53: #{tpu_custom_call.1} parent=5 // pred_check
        _
      $region54: #{tpu_custom_call.1} parent=5 // pred_check_branch
        %314 = sbr.rel (%p311) target = $region56
      $region55: #{tpu_custom_call.1} parent=5 // pred_region
        %s315 = ssub.s32 %s18, 1
        %p316 = scmp.lt.s32.totalorder %s28, 1
        %s317 = scalar_select %p316, %s28, 1
        %s318 = smul.addr %s317, 4
        %s319 = scalar_lea.vmem %s0, %s318
        %p320 = pneg %p63
        %p321 = pneg %p60
        %p322 = pneg %p84
        %p323 = pneg %p81
        %p324 = pneg %p105
        %p325 = pneg %p102
        %p326 = pneg %p126
        %p327 = pneg %p123
        %p328 = pneg %p147
        %p329 = pneg %p144
        %p330 = pneg %p168
        %p331 = pneg %p165
        %p332 = pneg %p189
        %p333 = pneg %p186
        %p334 = pneg %p210
        %p335 = pneg %p207
        %p336 = pneg %p231
        %p337 = pneg %p228
        %p338 = pneg %p259
        %p339 = pneg %p256
        %s340 = sand.u32 %s246, 1
        %s341 = scalar_lea.sflag [#allocation6], %s340
        %s342 = sand.u32 %s246, 1
        %s343 = smul.addr %s342, 8
        %s344 = scalar_lea.vmem [#allocation5], %s343
        %p345 = scmp.lt.s32.totalorder %s28, 1
        %s346 = scalar_select %p345, %s28, 1
        %s347 = smul.addr %s346, 4
        %s348 = scalar_lea.vmem %s0, %s347
        %p350 = scmp.eq.s32.totalorder %s29, 0
        // Predicated region
        $region57: #{tpu_custom_call.1} parent=55 // pred_check
          %p351 = pneg %p350
        $region58: #{tpu_custom_call.1} parent=55 // pred_check_branch
          %353 = sbr.rel (%p351) target = $region60
        $region59: #{tpu_custom_call.1} parent=55 // pred_region
          %v354 = vld [vmem:[%s348] sm:$0xf]
          %s355 = smul.u32 %s30, 4
          %s356 = smul.addr %s355, 4
          %s357 = scalar_lea.vmem %s3, %s356
          %v358 = vld [vmem:[%s357] sm:$0xf]
          %v359 = vld [vmem:[%s357 + $0x4] sm:$0xf]
          %v360 = vld [vmem:[%s357 + $0x8] sm:$0xf]
          %v361 = vld [vmem:[%s357 + $0xc] sm:$0xf]
          %s362 = scalar_lea.vmem %s4, %s30
          %v363 = vld [vmem:[%s362] sm:$0x1]
          %v365 = vlaneseq
          %v366 = vshrl.u32 %v365, 7
          %v367 = vsub.s32 0, %v366
          %v368 = vrot.slane %v363, %v367
          %v374 = vunpack.c.l.b16 %v358
          %v375 = vunpack.c.l.b16 %v359
          %v376 = vunpack.c.l.b16 %v360
          %v377 = vunpack.c.l.b16 %v361
          %v378 = vpack.c.b16 %v375, %v374
          %v379 = vpack.c.b16 %v377, %v376
          %vm382 = vcmask 261120
          %v384 = vsel %vm382, %v354, 0
          %386 = vmatprep.subr.bf16.mxu0 0
          %387 = vmatpush1.bf16.msra.mxu0 %v378
          %388 = vmatprep.subr.bf16.mxu0 0
          %389 = vmatpush1.bf16.msra.mxu0 %v379
          %390 = vmatprep.subr.bf16.mxu0 0
          %391 = vmatpush1.bf16.msra.mxu0 0
          %392 = vmatprep.subr.bf16.mxu0 0
          %393 = vmatpush1.bf16.msra.mxu0 0
          %394 = vmatprep.subr.bf16.mxu0 0
          %395 = vmatpush1.bf16.msra.mxu0 0
          %396 = vmatprep.subr.bf16.mxu0 0
          %397 = vmatpush1.bf16.msra.mxu0 0
          %398 = vmatprep.subr.bf16.mxu0 0
          %399 = vmatpush1.bf16.msra.mxu0 0
          %400 = vmatprep.subr.bf16.mxu0 0
          %401 = vmatpush1.bf16.msra.mxu0 0
          %402 = vmatprep.subr.bf16.mxu0 0
          %403 = vmatpush1.bf16.msra.mxu0 0
          %404 = vmatprep.subr.bf16.mxu0 0
          %405 = vmatpush1.bf16.msra.mxu0 0
          %406 = vmatprep.subr.bf16.mxu0 0
          %407 = vmatpush1.bf16.msra.mxu0 0
          %408 = vmatprep.subr.bf16.mxu0 0
          %409 = vmatpush1.bf16.msra.mxu0 0
          %410 = vmatprep.subr.bf16.mxu0 0
          %411 = vmatpush1.bf16.msra.mxu0 0
          %412 = vmatprep.subr.bf16.mxu0 0
          %413 = vmatpush1.bf16.msra.mxu0 0
          %414 = vmatprep.subr.bf16.mxu0 0
          %415 = vmatpush1.bf16.msra.mxu0 0
          %416 = vmatprep.subr.bf16.mxu0 0
          %417 = vmatpush1.bf16.msra.mxu0 0
          %418 = vmatprep.mubr.bf16.mxu0 0
          %419 = vmatmul.mubr.bf16.gmra.mrb[0].mxu0 %v384
          %v420 = vpop.f32.mrb[0].mxu0
          %v421 = vadd.f32 %v368, %v420
          %v422 = vpop.f32.mrb[0].mxu0
          %v423 = vpop.f32.mrb[0].mxu0
          %v424 = vpop.f32.mrb[0].mxu0
          %425 = vdwg.mxu0
          %s426 = smul.addr %s355, 4
          %s427 = scalar_lea.vmem %s5, %s426
          %v428 = vld [vmem:[%s427] sm:$0xf]
          %v429 = vld [vmem:[%s427 + $0x4] sm:$0xf]
          %v430 = vld [vmem:[%s427 + $0x8] sm:$0xf]
          %v431 = vld [vmem:[%s427 + $0xc] sm:$0xf]
          %s432 = scalar_lea.vmem %s6, %s30
          %v433 = vld [vmem:[%s432] sm:$0x1]
          %v435 = vlaneseq
          %v436 = vshrl.u32 %v435, 7
          %v437 = vsub.s32 0, %v436
          %v438 = vrot.slane %v433, %v437
          %v444 = vunpack.c.l.b16 %v428
          %v445 = vunpack.c.l.b16 %v429
          %v446 = vunpack.c.l.b16 %v430
          %v447 = vunpack.c.l.b16 %v431
          %v448 = vpack.c.b16 %v445, %v444
          %v449 = vpack.c.b16 %v447, %v446
          %452 = vmatprep.subr.bf16.mxu0 0
          %453 = vmatpush1.bf16.msra.mxu0 %v448
          %454 = vmatprep.subr.bf16.mxu0 0
          %455 = vmatpush1.bf16.msra.mxu0 %v449
          %456 = vmatprep.subr.bf16.mxu0 0
          %457 = vmatpush1.bf16.msra.mxu0 0
          %458 = vmatprep.subr.bf16.mxu0 0
          %459 = vmatpush1.bf16.msra.mxu0 0
          %460 = vmatprep.subr.bf16.mxu0 0
          %461 = vmatpush1.bf16.msra.mxu0 0
          %462 = vmatprep.subr.bf16.mxu0 0
          %463 = vmatpush1.bf16.msra.mxu0 0
          %464 = vmatprep.subr.bf16.mxu0 0
          %465 = vmatpush1.bf16.msra.mxu0 0
          %466 = vmatprep.subr.bf16.mxu0 0
          %467 = vmatpush1.bf16.msra.mxu0 0
          %468 = vmatprep.subr.bf16.mxu0 0
          %469 = vmatpush1.bf16.msra.mxu0 0
          %470 = vmatprep.subr.bf16.mxu0 0
          %471 = vmatpush1.bf16.msra.mxu0 0
          %472 = vmatprep.subr.bf16.mxu0 0
          %473 = vmatpush1.bf16.msra.mxu0 0
          %474 = vmatprep.subr.bf16.mxu0 0
          %475 = vmatpush1.bf16.msra.mxu0 0
          %476 = vmatprep.subr.bf16.mxu0 0
          %477 = vmatpush1.bf16.msra.mxu0 0
          %478 = vmatprep.subr.bf16.mxu0 0
          %479 = vmatpush1.bf16.msra.mxu0 0
          %480 = vmatprep.subr.bf16.mxu0 0
          %481 = vmatpush1.bf16.msra.mxu0 0
          %482 = vmatprep.subr.bf16.mxu0 0
          %483 = vmatpush1.bf16.msra.mxu0 0
          %484 = vmatprep.mubr.bf16.mxu0 0
          %485 = vmatmul.mubr.bf16.gmra.mrb[0].mxu0 %v384
          %v486 = vpop.f32.mrb[0].mxu0
          %v487 = vadd.f32 %v438, %v486
          %v488 = vpop.f32.mrb[0].mxu0
          %v489 = vpop.f32.mrb[0].mxu0
          %v490 = vpop.f32.mrb[0].mxu0
          %491 = vdwg.mxu0
          %v492 = vpack.c.bf16 %v421, %v421
          %s493 = smul.addr %s30, 4
          %s494 = scalar_lea.vmem [#allocation3], %s493
          %vm495 = vcmask 60416
          %496 = vst.msk [vmem:[%s494] sm:$0xf] %vm495, %v492
          %v497 = vpack.c.bf16 %v487, %v487
          %s498 = smul.addr %s30, 4
          %s499 = scalar_lea.vmem [#allocation4], %s498
          %500 = vst.msk [vmem:[%s499] sm:$0xf] %vm495, %v497
        $region60: #{tpu_custom_call.1} parent=55 // pred_fallthru
          _
        %s501 = smul.u32 %s29, 8
        %s502 = sshra.s32 %s501, 3
        %s503 = sand.u32 %s501, 7
        %s504 = smul.addr %s502, 4
        %s505 = scalar_lea.vmem %s348, %s504
        %v506 = vld [vmem:[%s505] sm:$0xf]
        %s507 = smul.u32 %s30, 4
        %s508 = smul.addr %s507, 4
        %s509 = scalar_lea.vmem %s1, %s508
        %v510 = vld [vmem:[%s509] sm:$0xf]
        %v511 = vld [vmem:[%s509 + $0x4] sm:$0xf]
        %v512 = vld [vmem:[%s509 + $0x8] sm:$0xf]
        %v513 = vld [vmem:[%s509 + $0xc] sm:$0xf]
        %s514 = scalar_lea.vmem %s2, %s30
        %v515 = vld [vmem:[%s514] sm:$0x1]
        %v517 = vlaneseq
        %v518 = vshrl.u32 %v517, 7
        %v519 = vsub.s32 0, %v518
        %v520 = vrot.slane %v515, %v519
        %v526 = vunpack.c.l.b16 %v510
        %v527 = vunpack.c.l.b16 %v511
        %v528 = vunpack.c.l.b16 %v512
        %v529 = vunpack.c.l.b16 %v513
        %v530 = vpack.c.b16 %v527, %v526
        %v531 = vpack.c.b16 %v529, %v528
        %vm534 = vcmask 261120
        %v536 = vsel %vm534, %v506, 0
        %538 = vmatprep.subr.bf16.mxu0 0
        %539 = vmatpush1.bf16.msra.mxu0 %v530
        %540 = vmatprep.subr.bf16.mxu0 0
        %541 = vmatpush1.bf16.msra.mxu0 %v531
        %542 = vmatprep.subr.bf16.mxu0 0
        %543 = vmatpush1.bf16.msra.mxu0 0
        %544 = vmatprep.subr.bf16.mxu0 0
        %545 = vmatpush1.bf16.msra.mxu0 0
        %546 = vmatprep.subr.bf16.mxu0 0
        %547 = vmatpush1.bf16.msra.mxu0 0
        %548 = vmatprep.subr.bf16.mxu0 0
        %549 = vmatpush1.bf16.msra.mxu0 0
        %550 = vmatprep.subr.bf16.mxu0 0
        %551 = vmatpush1.bf16.msra.mxu0 0
        %552 = vmatprep.subr.bf16.mxu0 0
        %553 = vmatpush1.bf16.msra.mxu0 0
        %554 = vmatprep.subr.bf16.mxu0 0
        %555 = vmatpush1.bf16.msra.mxu0 0
        %556 = vmatprep.subr.bf16.mxu0 0
        %557 = vmatpush1.bf16.msra.mxu0 0
        %558 = vmatprep.subr.bf16.mxu0 0
        %559 = vmatpush1.bf16.msra.mxu0 0
        %560 = vmatprep.subr.bf16.mxu0 0
        %561 = vmatpush1.bf16.msra.mxu0 0
        %562 = vmatprep.subr.bf16.mxu0 0
        %563 = vmatpush1.bf16.msra.mxu0 0
        %564 = vmatprep.subr.bf16.mxu0 0
        %565 = vmatpush1.bf16.msra.mxu0 0
        %566 = vmatprep.subr.bf16.mxu0 0
        %567 = vmatpush1.bf16.msra.mxu0 0
        %568 = vmatprep.subr.bf16.mxu0 0
        %569 = vmatpush1.bf16.msra.mxu0 0
        %570 = vmatprep.mubr.bf16.mxu0 0
        %571 = vmatmul.mubr.bf16.gmra.mrb[0].mxu0 %v536
        %v572 = vpop.f32.mrb[0].mxu0
        %v573 = vadd.f32 %v520, %v572
        %v574 = vpop.f32.mrb[0].mxu0
        %v575 = vpop.f32.mrb[0].mxu0
        %v576 = vpop.f32.mrb[0].mxu0
        %577 = vdwg.mxu0
        %s578 = smul.addr %s30, 4
        %s579 = scalar_lea.vmem [#allocation3], %s578
        %v580 = vld [vmem:[%s579] sm:$0xf]
        %s581 = smul.addr %s30, 4
        %s582 = scalar_lea.vmem [#allocation4], %s581
        %v583 = vld [vmem:[%s582] sm:$0xf]
        %v584 = vpack.c.bf16 %v573, %v573
        %vm585 = vcmask 64512
        %v587 = vsel %vm585, %v584, 0
        %v590 = vsel %vm585, %v580, 0
        %592 = vmatprep.subr.bf16.mxu0 0
        %593 = vmatpush1.bf16.xpose.msra.mxu0 %v590
        %594 = vmatprep.subr.bf16.mxu0 0
        %595 = vmatpush1.bf16.xpose.msra.mxu0 0
        %596 = vmatprep.subr.bf16.mxu0 0
        %597 = vmatpush1.bf16.xpose.msra.mxu0 0
        %598 = vmatprep.subr.bf16.mxu0 0
        %599 = vmatpush1.bf16.xpose.msra.mxu0 0
        %600 = vmatprep.subr.bf16.mxu0 0
        %601 = vmatpush1.bf16.xpose.msra.mxu0 0
        %602 = vmatprep.subr.bf16.mxu0 0
        %603 = vmatpush1.bf16.xpose.msra.mxu0 0
        %604 = vmatprep.subr.bf16.mxu0 0
        %605 = vmatpush1.bf16.xpose.msra.mxu0 0
        %606 = vmatprep.subr.bf16.mxu0 0
        %607 = vmatpush1.bf16.xpose.msra.mxu0 0
        %608 = vmatprep.subr.bf16.mxu0 0
        %609 = vmatpush1.bf16.xpose.msra.mxu0 0
        %610 = vmatprep.subr.bf16.mxu0 0
        %611 = vmatpush1.bf16.xpose.msra.mxu0 0
        %612 = vmatprep.subr.bf16.mxu0 0
        %613 = vmatpush1.bf16.xpose.msra.mxu0 0
        %614 = vmatprep.subr.bf16.mxu0 0
        %615 = vmatpush1.bf16.xpose.msra.mxu0 0
        %616 = vmatprep.subr.bf16.mxu0 0
        %617 = vmatpush1.bf16.xpose.msra.mxu0 0
        %618 = vmatprep.subr.bf16.mxu0 0
        %619 = vmatpush1.bf16.xpose.msra.mxu0 0
        %620 = vmatprep.subr.bf16.mxu0 0
        %621 = vmatpush1.bf16.xpose.msra.mxu0 0
        %622 = vmatprep.subr.bf16.mxu0 0
        %623 = vmatpush1.bf16.xpose.msra.mxu0 0
        %624 = vmatprep.mubr.bf16.mxu0 0
        %625 = vmatmul.mubr.bf16.gmra.mrb[0].mxu0 %v587
        %v626 = vpop.f32.mrb[0].mxu0
        %v627 = vadd.f32 0.0, %v626
        %v628 = vpop.f32.mrb[0].mxu0
        %v629 = vpop.f32.mrb[0].mxu0
        %v630 = vpop.f32.mrb[0].mxu0
        %631 = vdwg.mxu0
        %v632 = vlaneseq
        %v633 = vand.u32 %v632, 127
        %v634 = vlaneseq
        %v635 = vshrl.u32 %v634, 7
        %v636 = vstv %s501
        %v637 = vadd.s32 %v636, %v635
        %vm638 = vcmp.ge.s32.totalorder %v637, %v633
        %v639 = vsel %vm638, %v627, -1e+30
        %v640 = vsel %vm585, %v639, -inf
        %641 = vmax.xlane.f32.xlu0 %v640
        %v642 = vpop.xlane.xlu0 %641
        %v643 = vsub.f32 %v639, %v642
        %v644 = vmul.f32 %v643, 1.442695
        %v645 = vpow.pop %v644
        %v646 = vsel %vm585, %v645, 0.0
        %647 = vadd.xlane.f32.xlu0 %v646
        %v648 = vpop.xlane.xlu0 %647
        %v649 = vpack.c.bf16 %v645, %v645
        %v651 = vsel %vm585, %v649, 0
        %vm653 = vcmask 1043456
        %v655 = vsel %vm653, %v583, 0
        %657 = vmatprep.subr.bf16.mxu0 0
        %658 = vmatpush1.bf16.msra.mxu0 %v655
        %659 = vmatprep.subr.bf16.mxu0 0
        %660 = vmatpush1.bf16.msra.mxu0 0
        %661 = vmatprep.subr.bf16.mxu0 0
        %662 = vmatpush1.bf16.msra.mxu0 0
        %663 = vmatprep.subr.bf16.mxu0 0
        %664 = vmatpush1.bf16.msra.mxu0 0
        %665 = vmatprep.subr.bf16.mxu0 0
        %666 = vmatpush1.bf16.msra.mxu0 0
        %667 = vmatprep.subr.bf16.mxu0 0
        %668 = vmatpush1.bf16.msra.mxu0 0
        %669 = vmatprep.subr.bf16.mxu0 0
        %670 = vmatpush1.bf16.msra.mxu0 0
        %671 = vmatprep.subr.bf16.mxu0 0
        %672 = vmatpush1.bf16.msra.mxu0 0
        %673 = vmatprep.subr.bf16.mxu0 0
        %674 = vmatpush1.bf16.msra.mxu0 0
        %675 = vmatprep.subr.bf16.mxu0 0
        %676 = vmatpush1.bf16.msra.mxu0 0
        %677 = vmatprep.subr.bf16.mxu0 0
        %678 = vmatpush1.bf16.msra.mxu0 0
        %679 = vmatprep.subr.bf16.mxu0 0
        %680 = vmatpush1.bf16.msra.mxu0 0
        %681 = vmatprep.subr.bf16.mxu0 0
        %682 = vmatpush1.bf16.msra.mxu0 0
        %683 = vmatprep.subr.bf16.mxu0 0
        %684 = vmatpush1.bf16.msra.mxu0 0
        %685 = vmatprep.subr.bf16.mxu0 0
        %686 = vmatpush1.bf16.msra.mxu0 0
        %687 = vmatprep.subr.bf16.mxu0 0
        %688 = vmatpush1.bf16.msra.mxu0 0
        %689 = vmatprep.mubr.bf16.mxu0 0
        %690 = vmatmul.mubr.bf16.gmra.mrb[0].mxu0 %v651
        %v691 = vpop.f32.mrb[0].mxu0
        %v692 = vadd.f32 0.0, %v691
        %v693 = vpop.f32.mrb[0].mxu0
        %v694 = vpop.f32.mrb[0].mxu0
        %v695 = vpop.f32.mrb[0].mxu0
        %696 = vdwg.mxu0
        %v697 = vrcp.pop %v648
        %v698 = vmul.f32 %v692, %v697
        %p699 = scmp.eq.s32.totalorder %s30, 0
        // Predicated region
        $region61: #{tpu_custom_call.1} parent=55 // pred_check
          %p700 = pneg %p699
        $region62: #{tpu_custom_call.1} parent=55 // pred_check_branch
          %702 = sbr.rel (%p700) target = $region64
        $region63: #{tpu_custom_call.1} parent=55 // pred_region
          %703 = vst.msk [vmem:[#allocation2] sm:$0xff] %vm534, 0.0
        $region64: #{tpu_custom_call.1} parent=55 // pred_fallthru
          _
        %v704 = vld [vmem:[#allocation2] sm:$0xff]
        %v705 = vpack.c.bf16 %v698, %v698
        %s706 = smul.addr %s30, 4
        %s707 = scalar_lea.vmem %s7, %s706
        %v708 = vld [vmem:[%s707] sm:$0xf]
        %v710 = vsel %vm585, %v705, 0
        %v713 = vsel %vm653, %v708, 0
        %715 = vmatprep.subr.bf16.mxu0 0
        %716 = vmatpush1.bf16.msra.mxu0 %v713
        %717 = vmatprep.subr.bf16.mxu0 0
        %718 = vmatpush1.bf16.msra.mxu0 0
        %719 = vmatprep.subr.bf16.mxu0 0
        %720 = vmatpush1.bf16.msra.mxu0 0
        %721 = vmatprep.subr.bf16.mxu0 0
        %722 = vmatpush1.bf16.msra.mxu0 0
        %723 = vmatprep.subr.bf16.mxu0 0
        %724 = vmatpush1.bf16.msra.mxu0 0
        %725 = vmatprep.subr.bf16.mxu0 0
        %726 = vmatpush1.bf16.msra.mxu0 0
        %727 = vmatprep.subr.bf16.mxu0 0
        %728 = vmatpush1.bf16.msra.mxu0 0
        %729 = vmatprep.subr.bf16.mxu0 0
        %730 = vmatpush1.bf16.msra.mxu0 0
        %731 = vmatprep.subr.bf16.mxu0 0
        %732 = vmatpush1.bf16.msra.mxu0 0
        %733 = vmatprep.subr.bf16.mxu0 0
        %734 = vmatpush1.bf16.msra.mxu0 0
        %735 = vmatprep.subr.bf16.mxu0 0
        %736 = vmatpush1.bf16.msra.mxu0 0
        %737 = vmatprep.subr.bf16.mxu0 0
        %738 = vmatpush1.bf16.msra.mxu0 0
        %739 = vmatprep.subr.bf16.mxu0 0
        %740 = vmatpush1.bf16.msra.mxu0 0
        %741 = vmatprep.subr.bf16.mxu0 0
        %742 = vmatpush1.bf16.msra.mxu0 0
        %743 = vmatprep.subr.bf16.mxu0 0
        %744 = vmatpush1.bf16.msra.mxu0 0
        %745 = vmatprep.subr.bf16.mxu0 0
        %746 = vmatpush1.bf16.msra.mxu0 0
        %747 = vmatprep.mubr.bf16.mxu0 0
        %748 = vmatmul.mubr.bf16.gmra.mrb[0].mxu0 %v710
        %v749 = vpop.f32.mrb[0].mxu0
        %v750 = vadd.f32 0.0, %v749
        %v751 = vpop.f32.mrb[0].mxu0
        %v752 = vpop.f32.mrb[0].mxu0
        %v753 = vpop.f32.mrb[0].mxu0
        %754 = vdwg.mxu0
        %v755 = vadd.f32 %v704, %v750
        %756 = vst.msk [vmem:[#allocation2] sm:$0xff] %vm534, %v755
        %p757 = scmp.eq.s32.totalorder %s30, 3
        // Predicated region
        $region65: #{tpu_custom_call.1} parent=55 // pred_check
          %p758 = pneg %p757
        $region66: #{tpu_custom_call.1} parent=55 // pred_check_branch
          %760 = sbr.rel (%p758) target = $region68
        $region67: #{tpu_custom_call.1} parent=55 // pred_region
          %v761 = vld [vmem:[#allocation2] sm:$0xff]
          %v762 = vld [vmem:[%s8] sm:$0x1]
          %v764 = vlaneseq
          %v765 = vshrl.u32 %v764, 7
          %v766 = vsub.s32 0, %v765
          %v767 = vrot.slane %v762, %v766
          %v769 = vadd.f32 %v761, %v767
          %770 = vst.msk [vmem:[%s344] sm:$0xff] %vm534, %v769
        $region68: #{tpu_custom_call.1} parent=55 // pred_fallthru
          _
        %s771 = sand.u32 %s246, 1
        %s772 = scalar_lea.sflag [#allocation6], %s771
        %s773 = sand.u32 %s246, 1
        %s774 = smul.addr %s773, 8
        %s775 = scalar_lea.vmem [#allocation5], %s774
        // Predicated region
        $region69: #{tpu_custom_call.1} parent=55 // pred_check
          %p776 = pneg %p256
        $region70: #{tpu_custom_call.1} parent=55 // pred_check_branch
          %778 = sbr.rel (%p776) target = $region72
        $region71: #{tpu_custom_call.1} parent=55 // pred_region
          %s780 = ssub.s32 128, 128
          %781 = vsyncadd %s772, %s780
          %s782 = sadd.s32 %s29, %s28
          %s783 = smul.addr %s782, 128
          %s784 = scalar_lea.hbm %s9, %s783
          %s786 = sshll.u32 %s775, 4
          %s787 = int_to_ptr.vmem [resolvable:$true] %s786
          %789 = dma.vmem_to_hbm [thread:$0]  %s787, 128, %s784, %s772
        $region72: #{tpu_custom_call.1} parent=55 // pred_fallthru
          _
      $region56: #{tpu_custom_call.1} parent=5 // pred_fallthru
        _
      %p790 = scmp.le.s32.totalorder 2, %s18
      // Predicated region
      $region73: #{tpu_custom_call.1} parent=5 // pred_check
        %p791 = pneg %p790
      $region74: #{tpu_custom_call.1} parent=5 // pred_check_branch
        %793 = sbr.rel (%p791) target = $region76
      $region75: #{tpu_custom_call.1} parent=5 // pred_region
        %s794 = ssub.s32 %s18, 2
        // Predicated region
        $region77: #{tpu_custom_call.1} parent=75 // pred_check
          %p795 = pneg %p262
        $region78: #{tpu_custom_call.1} parent=75 // pred_check_branch
          %797 = sbr.rel (%p795) target = $region80
        $region79: #{tpu_custom_call.1} parent=75 // pred_region
          %s798 = sand.u32 %s247, 1
          %s799 = scalar_lea.sflag [#allocation6], %s798
          %s800 = sand.u32 %s247, 1
          %s801 = smul.addr %s800, 8
          %s802 = scalar_lea.vmem [#allocation5], %s801
          %803 = dma.done %s799, 128
        $region80: #{tpu_custom_call.1} parent=75 // pred_fallthru
          _
      $region76: #{tpu_custom_call.1} parent=5 // pred_fallthru
        _
    $region6: #{tpu_custom_call.1} parent=1 // loop_footer
      %s22 = sadd.s32 1, %s18
    $region7: #{tpu_custom_call.1} parent=1 // loop_footer_branch
      %17 = sbr.rel target = $region3
    $region8: #{tpu_custom_call.1} parent=1 // loop_exit
      _
    %804 = vsyncpa [#allocation6], 1
    %s805 = scalar_lea.sflag [#allocation6], 1
    %806 = vsyncpa %s805, 1

</llo_original>
